<compile_context>
chip_gen: v7x
topology: tpu7x:2x2x1
jax: 0.10.0
libtpu: 0.0.40
codegen_flags: <defaults>
</compile_context>

<pallas_src>
from functools import partial

import numpy as np
import jax
import jax.numpy as jnp
from jax import lax
from jax.experimental import pallas as pl
from jax.experimental.pallas import tpu as pltpu

# Per-buffer element budget for a logits tile (lane dim pads to 128 in VMEM):
# 8192*128*4B = 4 MiB -> double-buffered inputs + lane-dense f32 temporaries stay
# well under the 48 MiB scoped-VMEM cap (and v7x's 64 MiB physical VMEM).
_MAX_TILE_ELEMS = 8192 * 128
_VMEM_LIMIT = 48 * 1024 * 1024


def _round_up(x, m):
    return ((x + m - 1) // m) * m


def _plan(n_rows, n_classes):
    """Pick (tile_n, num_tiles, n_par, n_seq) for the row grid."""
    c_lanes = _round_up(max(n_classes, 1), 128)
    tile_cap = max(128, (_MAX_TILE_ELEMS // c_lanes) // 128 * 128)
    if n_rows <= tile_cap:
        # Single tile: block == full row extent (satisfies BlockSpec constraints for
        # any n_rows and needs no wrapper-side padding at all).
        return n_rows, 1, 1, 1
    tile_n = tile_cap                       # multiple of 128
    num_tiles = pl.cdiv(n_rows, tile_n)     # >= 2 here
    n_par = 2                               # feed both v7x TensorCores
    n_seq = pl.cdiv(num_tiles, n_par)
    return tile_n, num_tiles, n_par, n_seq


def _set_criterion_kernel(logits_ref, tgt_ref, out_ref, *, n_rows, tile_n, n_seq,
                          eos_coef):
    """Weighted softmax cross-entropy + matched top-1 accuracy, accumulated in out_ref.

    logits_ref: (TILE_N, C) native dtype VMEM (rows x classes, producer layout)
    tgt_ref:    (1, TILE_N) int32      VMEM (C-1 == "no object"; garbage in OOB tail)
    out_ref:    (1, 4, 1)   f32        VMEM accumulator, resident across the s axis:
                [weighted_loss_sum, weight_sum, n_correct, n_matched]
    """
    p = pl.program_id(0)
    s = pl.program_id(1)

    @pl.when(s == 0)
    def _init():
        out_ref[...] = jnp.zeros_like(out_ref)

    tile_idx = p * n_seq + s                       # un-clamped linear tile index

    # Single cast per tile (f32 math: v5e has no bf16 VPU/EUP path), then transpose
    # in VMEM to the lane-dense layout: classes on sublanes, rows on lanes.
    logits = jnp.transpose(logits_ref[...].astype(jnp.float32))      # (C, T)
    c, t = logits.shape
    tgt = tgt_ref[...]                                               # (1, T) int32

    # Row-validity mask replaces the old wrapper-side jnp.pad: kills the ragged tail
    # of the last tile and entire phantom (clamped) grid steps.
    lane = lax.broadcasted_iota(jnp.int32, (1, t), 1)
    valid = (tile_idx * tile_n + lane) < n_rows                      # (1, T)
    logits = jnp.where(valid, logits, 0.0)      # no Inf/NaN may leak past w=0
    tgt = jnp.where(valid, tgt, -1)

    class_ids = lax.broadcasted_iota(jnp.int32, (c, t), 0)
    onehot = class_ids == tgt                                        # (C, T)

    # log-softmax along the class (sublane) axis; nll = lse - shifted[target]
    # (no materialized logp / picked_logp temporaries).
    col_max = jnp.max(logits, axis=0, keepdims=True)                 # (1, T)
    shifted = logits - col_max                                       # (C, T)
    lse = jnp.log(jnp.sum(jnp.exp(shifted), axis=0, keepdims=True))  # (1, T)
    picked = jnp.sum(jnp.where(onehot, shifted, 0.0), axis=0, keepdims=True)
    nll = lse - picked                                               # (1, T)

    # empty_weight straight from the target id (no (C,1) weight input).
    # NOTE: out-of-range labels (tgt >= C) silently get weight 0 (torch would raise).
    in_range = jnp.logical_and(tgt >= 0, tgt < c)
    w_row = jnp.where(in_range,
                      jnp.where(tgt == c - 1, jnp.float32(eos_coef), jnp.float32(1.0)),
                      jnp.float32(0.0))                              # (1, T)

    # Matched top-1 accuracy.  shifted == 0  <=>  logit == col_max (exact in f32);
    # min-index tie-break reproduces torch.max first-occurrence argmax semantics.
    matched = jnp.logical_and(tgt >= 0, tgt != c - 1).astype(jnp.float32)
    pred = jnp.min(jnp.where(shifted == 0.0, class_ids, c), axis=0, keepdims=True)
    correct = matched * (pred == tgt).astype(jnp.float32)

    # One fused cross-lane reduction for all four statistics.
    stacked = jnp.concatenate([w_row * nll, w_row, correct, matched], axis=0)  # (4, T)
    out_ref[...] += jnp.sum(stacked, axis=1, keepdims=True)[None]              # (1,4,1)


@partial(jax.jit, static_argnames=("num_classes", "eos_coef"))
def _labels_loss_device(pred_logits, match_bql, *, num_classes, eos_coef):
    """pred_logits: (B, Q, C+1) native dtype.  match_bql: (3, K) int32 rows
    (batch_idx, query_idx, label); padded columns must repeat a real column or be
    (0, 0, num_classes) so the scatter stays idempotent.
    Returns (loss_ce, class_error) f32 scalars."""
    b, q, c1 = pred_logits.shape
    n = b * q

    # Dense target map built on-device inside the same jit as the kernel.
    target_classes = jnp.full((b, q), num_classes, dtype=jnp.int32)
    target_classes = target_classes.at[match_bql[0], match_bql[1]].set(match_bql[2])

    logits_2d = pred_logits.reshape(n, c1)      # free reshape; native dtype to kernel
    tgt_row = target_classes.reshape(1, n)      # lane-dense int32 row

    tile_n, num_tiles, n_par, n_seq = _plan(n, c1)
    last = num_tiles - 1

    kernel = partial(_set_criterion_kernel, n_rows=n, tile_n=tile_n, n_seq=n_seq,
                     eos_coef=float(eos_coef))

    partials = pl.pallas_call(
        kernel,
        out_shape=jax.ShapeDtypeStruct((n_par, 4, 1), jnp.float32),
        grid=(n_par, n_seq),
        in_specs=[
            # Clamp phantom steps (p*n_seq+s >= num_tiles) onto the last real tile;
            # the in-kernel validity mask zeroes their contribution.
            pl.BlockSpec((tile_n, c1),
                         lambda p, s: (jnp.minimum(p * n_seq + s, last), 0)),
            pl.BlockSpec((1, tile_n),
                         lambda p, s: (0, jnp.minimum(p * n_seq + s, last))),
        ],
        out_specs=pl.BlockSpec((1, 4, 1), lambda p, s: (p, 0, 0)),
        compiler_params=pltpu.CompilerParams(
            dimension_semantics=("parallel", "arbitrary"),
            vmem_limit_bytes=_VMEM_LIMIT,
        ),
    )(logits_2d, tgt_row)

    stats = jnp.sum(partials[:, :, 0], axis=0)                       # (4,)
    loss_sum, w_sum = stats[0], stats[1]
    n_correct, n_matched = stats[2], stats[3]
    loss_ce = jnp.where(w_sum > 0, loss_sum / jnp.where(w_sum > 0, w_sum, 1.0), 0.0)
    acc = jnp.where(n_matched > 0,
                    100.0 * n_correct / jnp.where(n_matched > 0, n_matched, 1.0), 0.0)
    class_error = 100.0 - acc
    return loss_ce, class_error


class SetCriterion:
    """JAX/Pallas port of the DETR SetCriterion (losses=['labels'] path)."""

    def __init__(self, num_classes, matcher, weight_dict, eos_coef, losses,
                 use_mixup=False, mixup_alpha=0.2):
        self.num_classes = num_classes
        self.matcher = matcher
        self.weight_dict = weight_dict
        self.eos_coef = eos_coef
        self.losses = losses
        self.use_mixup = use_mixup
        self.mixup_alpha = mixup_alpha
        ew = np.ones(num_classes + 1, dtype=np.float32)
        ew[-1] = eos_coef                       # buffer 'empty_weight' (API parity)
        self.empty_weight = jnp.asarray(ew)

    def loss_labels(self, outputs, targets, indices, log=True,
                    use_mixup=False, num_masks=None):
        assert 'pred_logits' in outputs
        src_logits = outputs['pred_logits']     # [B, Q, C+1], native dtype (f32/bf16)
        b, q, c1 = src_logits.shape
        assert c1 == self.num_classes + 1
        assert not use_mixup  # TODO(synk): mixup path (dense soft targets) not implemented

        # Flatten the (small, ragged) matcher output into ONE (3, K) int32 transfer.
        # TODO(synk): the Hungarian matcher itself stays host-side (no Pallas equivalent).
        rows = []
        for i, (t, (src, tgt)) in enumerate(zip(targets, indices)):
            src = np.asarray(src, dtype=np.int64)
            tgt = np.asarray(tgt, dtype=np.int64)
            if src.size:
                lab = np.asarray(t['labels'], dtype=np.int64)[tgt]
                rows.append(np.stack([np.full_like(src, i), src, lab]))
        match = (np.concatenate(rows, axis=1).astype(np.int32) if rows
                 else np.zeros((3, 0), dtype=np.int32))

        # Pad to a power-of-two capacity with idempotent entries (bounded recompiles).
        k = match.shape[1]
        k_cap = 1 if k == 0 else int(2 ** int(np.ceil(np.log2(k))))
        if k_cap > k:
            if k:
                pad = np.repeat(match[:, -1:], k_cap - k, axis=1)   # repeat: idempotent
            else:
                pad = np.zeros((3, k_cap - k), dtype=np.int32)
                pad[2, :] = self.num_classes                        # writes the fill value
            match = np.concatenate([match, pad], axis=1)

        loss_ce, class_error = _labels_loss_device(
            src_logits, jnp.asarray(match),
            num_classes=self.num_classes, eos_coef=float(self.eos_coef))

        losses = {'loss': loss_ce}
        if log and (not use_mixup):
            losses['class_error'] = class_error
        return losses

    def get_loss(self, loss, outputs, targets, indices, **kwargs):
        loss_map = {'labels': self.loss_labels}
        assert loss in loss_map, f'do you really want to compute {loss} loss?'
        return loss_map[loss](outputs, targets, indices, **kwargs)

    def forward(self, outputs, targets, use_mixup=False, num_masks=None):
        if not use_mixup:
            outputs_without_aux = {k: v for k, v in outputs.items() if k != 'aux_outputs'}
            indices = self.matcher(outputs_without_aux, targets)
        else:
            indices = None
        losses = {}
        for loss in self.losses:
            losses.update(self.get_loss(loss, outputs, targets, indices,
                                        use_mixup=use_mixup, num_masks=num_masks))
        return losses

    __call__ = forward


def identity_matcher(outputs, targets):
    # TODO(synk): Hungarian assignment (scipy.linear_sum_assignment) has no Pallas
    # equivalent; DETR runs it on CPU. A deterministic identity matching is used.
    indices = []
    for t in targets:
        n = int(np.asarray(t['labels']).shape[0])
        indices.append((np.arange(n, dtype=np.int64), np.arange(n, dtype=np.int64)))
    return indices


if __name__ == "__main__":
    key = jax.random.PRNGKey(0)
    B, Q, NUM_CLASSES = 2, 8, 7
    C1 = NUM_CLASSES + 1

    k_logits, k_lab0, k_lab1 = jax.random.split(key, 3)
    pred_logits = jax.random.normal(k_logits, (B, Q, C1), dtype=jnp.float32)
    labels0 = jax.random.randint(k_lab0, (3,), 0, NUM_CLASSES, dtype=jnp.int32)
    labels1 = jax.random.randint(k_lab1, (5,), 0, NUM_CLASSES, dtype=jnp.int32)

    outputs = {'pred_logits': pred_logits}
    targets = [{'labels': np.asarray(labels0)}, {'labels': np.asarray(labels1)}]

    criterion = SetCriterion(
        num_classes=NUM_CLASSES,
        matcher=identity_matcher,
        weight_dict={'loss': 1.0},
        eos_coef=0.1,
        losses=['labels'],
    )

    losses = criterion(outputs, targets)
    loss = jax.block_until_ready(losses['loss'])
    class_error = jax.block_until_ready(losses['class_error'])

    # Pure-JAX / numpy reference check of the weighted cross-entropy + accuracy semantics.
    tc = np.full((B, Q), NUM_CLASSES, dtype=np.int32)
    for i, (t, (src, tgt)) in enumerate(zip(targets, identity_matcher(outputs, targets))):
        tc[i, np.asarray(src)] = np.asarray(t['labels'])[np.asarray(tgt)]
    tflat = tc.reshape(-1)
    logp = jax.nn.log_softmax(pred_logits.reshape(B * Q, C1), axis=-1)
    ew = np.ones(C1, dtype=np.float32); ew[-1] = 0.1
    w_rows = ew[tflat]
    nll = -logp[jnp.arange(B * Q), tflat]
    ref_loss = jnp.sum(w_rows * nll) / jnp.sum(w_rows)
    np.testing.assert_allclose(np.asarray(loss), np.asarray(ref_loss), rtol=1e-5, atol=1e-5)

    matched_mask = tflat != NUM_CLASSES
    pred_np = np.argmax(np.asarray(pred_logits).reshape(B * Q, C1), axis=-1)
    acc_ref = 100.0 * float(np.mean(pred_np[matched_mask] == tflat[matched_mask]))
    ref_class_error = 100.0 - acc_ref
    np.testing.assert_allclose(np.asarray(class_error), ref_class_error, rtol=1e-5, atol=1e-4)

    assert np.isfinite(np.asarray(loss)) and np.isfinite(np.asarray(class_error))
    print("KERNEL_OK")
</pallas_src>

<mosaic_0001>
module attributes {stable_mosaic.version = 11 : i64} {
  func.func @_set_criterion_kernel(%arg0: i32, %arg1: i32, %arg2: memref<16x8xf32, #tpu.memory_space<vmem>>, %arg3: memref<1x16xi32, #tpu.memory_space<vmem>>, %arg4: memref<1x4x1xf32, #tpu.memory_space<vmem>>) attributes {dimension_semantics = [#tpu.dimension_semantics<parallel>, #tpu.dimension_semantics<arbitrary>], iteration_bounds = array<i64: 1, 1>, scalar_prefetch = 0 : i64, scratch_operands = 0 : i64, tpu.core_type = #tpu.core_type<tc>, window_params = [{transform_indices = @transform_0, window_bounds = array<i64: 16, 8>}, {transform_indices = @transform_1, window_bounds = array<i64: 1, 16>}, {transform_indices = @transform_2, window_bounds = array<i64: 1, 4, 1>}]} {
    %c0_i32 = arith.constant 0 : i32
    %0 = arith.cmpi eq, %arg1, %c0_i32 : i32
    %1 = arith.extui %0 : i1 to i32
    %c0_i32_0 = arith.constant 0 : i32
    %2 = arith.cmpi ne, %1, %c0_i32_0 : i32
    scf.if %2 {
      %cst_25 = arith.constant 0.000000e+00 : f32
      %73 = vector.broadcast %cst_25 : f32 to vector<1x4x1xf32>
      %c0_26 = arith.constant 0 : index
      %c0_27 = arith.constant 0 : index
      %c0_28 = arith.constant 0 : index
      %74 = vector.load %arg4[%c0_26, %c0_27, %c0_28] : memref<1x4x1xf32, #tpu.memory_space<vmem>>, vector<1x4x1xf32>
      tpu.vector_store %arg4[%c0_26, %c0_27, %c0_28], %73 {strides = array<i32>} : memref<1x4x1xf32, #tpu.memory_space<vmem>>, vector<1x4x1xf32>,
    } else {
    }
    %c1_i32 = arith.constant 1 : i32
    %3 = arith.muli %arg0, %c1_i32 : i32
    %4 = arith.addi %3, %arg1 : i32
    %c0 = arith.constant 0 : index
    %c0_1 = arith.constant 0 : index
    %5 = vector.load %arg2[%c0, %c0_1] : memref<16x8xf32, #tpu.memory_space<vmem>>, vector<16x8xf32>
    %6 = tpu.transpose %5, [1, 0] : vector<16x8xf32> -> vector<8x16xf32>
    %c0_2 = arith.constant 0 : index
    %c0_3 = arith.constant 0 : index
    %7 = vector.load %arg3[%c0_2, %c0_3] : memref<1x16xi32, #tpu.memory_space<vmem>>, vector<1x16xi32>
    %8 = tpu.iota {dimensions = array<i32: 1>} : vector<1x16xi32>
    %c16_i32 = arith.constant 16 : i32
    %9 = arith.muli %4, %c16_i32 : i32
    %10 = vector.broadcast %9 : i32 to vector<1x16xi32>
    %11 = arith.addi %10, %8 : vector<1x16xi32>
    %c16_i32_4 = arith.constant 16 : i32
    %12 = vector.broadcast %c16_i32_4 : i32 to vector<1x16xi32>
    %13 = arith.cmpi slt, %11, %12 : vector<1x16xi32>
    %cst = arith.constant 0.000000e+00 : f32
    %14 = vector.shape_cast %13 : vector<1x16xi1> to vector<1x16xi1>
    %15 = vector.broadcast %14 : vector<1x16xi1> to vector<8x16xi1>
    %16 = vector.broadcast %cst : f32 to vector<8x16xf32>
    %17 = arith.select %15, %6, %16 : vector<8x16xi1>, vector<8x16xf32>
    %c-1_i32 = arith.constant -1 : i32
    %18 = vector.broadcast %c-1_i32 : i32 to vector<1x16xi32>
    %19 = arith.select %13, %7, %18 : vector<1x16xi1>, vector<1x16xi32>
    %20 = tpu.iota {dimensions = array<i32: 0>} : vector<8x16xi32>
    %21 = vector.broadcast %19 : vector<1x16xi32> to vector<8x16xi32>
    %22 = arith.cmpi eq, %20, %21 : vector<8x16xi32>
    %cst_5 = arith.constant dense<0xFF800000> : vector<16xf32>
    %23 = vector.multi_reduction <maximumf>, %17, %cst_5 [0] : vector<8x16xf32> to vector<16xf32>
    %24 = vector.shape_cast %23 : vector<16xf32> to vector<1x16xf32>
    %25 = vector.broadcast %24 : vector<1x16xf32> to vector<8x16xf32>
    %26 = arith.subf %17, %25 : vector<8x16xf32>
    %27 = math.exp %26 : vector<8x16xf32>
    %cst_6 = arith.constant dense<0.000000e+00> : vector<16xf32>
    %28 = vector.multi_reduction <add>, %27, %cst_6 [0] : vector<8x16xf32> to vector<16xf32>
    %29 = vector.shape_cast %28 : vector<16xf32> to vector<1x16xf32>
    %30 = math.log %29 : vector<1x16xf32>
    %cst_7 = arith.constant 0.000000e+00 : f32
    %31 = vector.broadcast %cst_7 : f32 to vector<8x16xf32>
    %32 = arith.select %22, %26, %31 : vector<8x16xi1>, vector<8x16xf32>
    %cst_8 = arith.constant dense<0.000000e+00> : vector<16xf32>
    %33 = vector.multi_reduction <add>, %32, %cst_8 [0] : vector<8x16xf32> to vector<16xf32>
    %34 = vector.shape_cast %33 : vector<16xf32> to vector<1x16xf32>
    %35 = arith.subf %30, %34 : vector<1x16xf32>
    %c0_i32_9 = arith.constant 0 : i32
    %36 = vector.broadcast %c0_i32_9 : i32 to vector<1x16xi32>
    %37 = arith.cmpi sge, %19, %36 : vector<1x16xi32>
    %c8_i32 = arith.constant 8 : i32
    %38 = vector.broadcast %c8_i32 : i32 to vector<1x16xi32>
    %39 = arith.cmpi slt, %19, %38 : vector<1x16xi32>
    %40 = arith.andi %37, %39 : vector<1x16xi1>
    %c7_i32 = arith.constant 7 : i32
    %41 = vector.broadcast %c7_i32 : i32 to vector<1x16xi32>
    %42 = arith.cmpi eq, %19, %41 : vector<1x16xi32>
    %cst_10 = arith.constant 1.000000e-01 : f32
    %cst_11 = arith.constant 1.000000e+00 : f32
    %43 = vector.broadcast %cst_10 : f32 to vector<1x16xf32>
    %44 = vector.broadcast %cst_11 : f32 to vector<1x16xf32>
    %45 = arith.select %42, %43, %44 : vector<1x16xi1>, vector<1x16xf32>
    %cst_12 = arith.constant 0.000000e+00 : f32
    %46 = vector.broadcast %cst_12 : f32 to vector<1x16xf32>
    %47 = arith.select %40, %45, %46 : vector<1x16xi1>, vector<1x16xf32>
    %c0_i32_13 = arith.constant 0 : i32
    %48 = vector.broadcast %c0_i32_13 : i32 to vector<1x16xi32>
    %49 = arith.cmpi sge, %19, %48 : vector<1x16xi32>
    %c7_i32_14 = arith.constant 7 : i32
    %50 = vector.broadcast %c7_i32_14 : i32 to vector<1x16xi32>
    %51 = arith.cmpi ne, %19, %50 : vector<1x16xi32>
    %52 = arith.andi %49, %51 : vector<1x16xi1>
    %53 = arith.extui %52 : vector<1x16xi1> to vector<1x16xi32>
    %54 = arith.sitofp %53 : vector<1x16xi32> to vector<1x16xf32>
    %cst_15 = arith.constant 0.000000e+00 : f32
    %55 = vector.broadcast %cst_15 : f32 to vector<8x16xf32>
    %56 = arith.cmpf oeq, %26, %55 : vector<8x16xf32>
    %c8_i32_16 = arith.constant 8 : i32
    %57 = vector.broadcast %c8_i32_16 : i32 to vector<8x16xi32>
    %58 = arith.select %56, %20, %57 : vector<8x16xi1>, vector<8x16xi32>
    %cst_17 = arith.constant dense<2147483647> : vector<16xi32>
    %59 = vector.multi_reduction <minsi>, %58, %cst_17 [0] : vector<8x16xi32> to vector<16xi32>
    %60 = vector.shape_cast %59 : vector<16xi32> to vector<1x16xi32>
    %61 = arith.cmpi eq, %60, %19 : vector<1x16xi32>
    %62 = arith.extui %61 : vector<1x16xi1> to vector<1x16xi32>
    %63 = arith.sitofp %62 : vector<1x16xi32> to vector<1x16xf32>
    %64 = arith.mulf %54, %63 : vector<1x16xf32>
    %65 = arith.mulf %47, %35 : vector<1x16xf32>
    %66 = tpu.concatenate %65, %47, %64, %54 in 0 : vector<1x16xf32>, vector<1x16xf32>, vector<1x16xf32>, vector<1x16xf32> -> vector<4x16xf32>
    %c0_18 = arith.constant 0 : index
    %c0_19 = arith.constant 0 : index
    %c0_20 = arith.constant 0 : index
    %67 = vector.load %arg4[%c0_18, %c0_19, %c0_20] : memref<1x4x1xf32, #tpu.memory_space<vmem>>, vector<1x4x1xf32>
    %cst_21 = arith.constant dense<0.000000e+00> : vector<4xf32>
    %68 = vector.multi_reduction <add>, %66, %cst_21 [1] : vector<4x16xf32> to vector<4xf32>
    %69 = vector.shape_cast %68 : vector<4xf32> to vector<4x1xf32>
    %70 = vector.shape_cast %69 : vector<4x1xf32> to vector<1x4x1xf32>
    %71 = arith.addf %67, %70 : vector<1x4x1xf32>
    %c0_22 = arith.constant 0 : index
    %c0_23 = arith.constant 0 : index
    %c0_24 = arith.constant 0 : index
    %72 = vector.load %arg4[%c0_22, %c0_23, %c0_24] : memref<1x4x1xf32, #tpu.memory_space<vmem>>, vector<1x4x1xf32>
    tpu.vector_store %arg4[%c0_22, %c0_23, %c0_24], %71 {strides = array<i32>} : memref<1x4x1xf32, #tpu.memory_space<vmem>>, vector<1x4x1xf32>,
    return
  }
  func.func @transform_0(%arg0: i32, %arg1: i32) -> (i32, i32) {
    %c1_i32 = arith.constant 1 : i32
    %0 = arith.muli %arg0, %c1_i32 : i32
    %1 = arith.addi %0, %arg1 : i32
    %c0_i32 = arith.constant 0 : i32
    %2 = arith.minsi %1, %c0_i32 : i32
    %c0_i32_0 = arith.constant 0 : i32
    %c0_i32_1 = arith.constant 0 : i32
    return %2, %c0_i32_0 : i32, i32
  }
  func.func @transform_1(%arg0: i32, %arg1: i32) -> (i32, i32) {
    %c1_i32 = arith.constant 1 : i32
    %0 = arith.muli %arg0, %c1_i32 : i32
    %1 = arith.addi %0, %arg1 : i32
    %c0_i32 = arith.constant 0 : i32
    %2 = arith.minsi %1, %c0_i32 : i32
    %c0_i32_0 = arith.constant 0 : i32
    %c0_i32_1 = arith.constant 0 : i32
    return %c0_i32_0, %2 : i32, i32
  }
  func.func @transform_2(%arg0: i32, %arg1: i32) -> (i32, i32, i32) {
    %c0_i32 = arith.constant 0 : i32
    %c0_i32_0 = arith.constant 0 : i32
    %c0_i32_1 = arith.constant 0 : i32
    return %arg0, %c0_i32, %c0_i32_0 : i32, i32, i32
  }
}

</mosaic_0001>

<llo_original>
// kernel: _labels_loss_device.1
$region0: #{_labels_loss_device.1}
  #allocation0 [shape = 'u32[]', space=smem, size = 0x4, offset = 0x4, fixed_abs, tag = 'smem constant byte address 0x4 - core index']
  #allocation1 [shape = 'u32[144,128]{1,0:T(1,128)}', space=vmem, size = 0x12000, scoped, tag = 'internal scratch']
  %s0 = inlined_call_operand.vmem [shape: f32[16,8], index: 0, kind: input, shape index: {}]
  %s1 = inlined_call_operand.vmem [shape: s32[1,16], index: 1, kind: input, shape index: {}]
  %s2 = inlined_call_operand.vmem [shape: f32[1,4,1], index: 2, kind: output, shape index: {}]
  %s3 = sld [smem:[#allocation0]]
  $region22: #{_labels_loss_device.1} parent=0
    _
  %s5 = ssub.s32 1, %s3
  %s6 = scalar_select 0, %s5, %s3
  // Predicated region
  $region2: #{_labels_loss_device.1} parent=0 // pred_check
    _
  $region3: #{_labels_loss_device.1} parent=0 // pred_check_branch
    %8 = sbr.rel (0) target = $region5
  $region4: #{_labels_loss_device.1} parent=0 // pred_region
    %s9 = sadd.s32 0, 0
    %p10 = scmp.lt.s32.totalorder %s9, 0
    %s11 = scalar_select %p10, %s9, 0
    %s12 = smul.u32 2, %s11
    %p13 = scmp.lt.s32.totalorder %s12, 1
    %s14 = scalar_select %p13, %s12, 1
    %s15 = smul.addr %s14, 8
    %s16 = scalar_lea.vmem %s0, %s15
    %s17 = sadd.s32 0, 0
    %p18 = scmp.lt.s32.totalorder %s17, 0
    %s19 = scalar_select %p18, %s17, 0
    %s20 = smul.u32 2, %s19
  $region5: #{_labels_loss_device.1} parent=0 // pred_fallthru
    _
  // Predicated region
  $region6: #{_labels_loss_device.1} parent=0 // pred_check
    _
  $region7: #{_labels_loss_device.1} parent=0 // pred_check_branch
    %22 = sbr.rel (0) target = $region9
  $region8: #{_labels_loss_device.1} parent=0 // pred_region
    %s23 = sadd.s32 0, 0
    %p24 = scmp.lt.s32.totalorder %s23, 0
    %s25 = scalar_select %p24, %s23, 0
    %p26 = scmp.lt.s32.totalorder %s25, 0
    %s27 = scalar_select %p26, %s25, 0
    %s28 = scalar_lea.vmem %s1, %s27
    %s29 = sadd.s32 0, 0
    %p30 = scmp.lt.s32.totalorder %s29, 0
    %s31 = scalar_select %p30, %s29, 0
  $region9: #{_labels_loss_device.1} parent=0 // pred_fallthru
    _
  %s32 = sadd.s32 0, 0
  %p33 = scmp.lt.s32.totalorder %s32, 0
  %s34 = scalar_select %p33, %s32, 0
  %s35 = smul.u32 2, %s34
  %p36 = scmp.lt.s32.totalorder %s35, 1
  %s37 = scalar_select %p36, %s35, 1
  %s38 = smul.addr %s37, 8
  %s39 = scalar_lea.vmem %s0, %s38
  %s40 = sadd.s32 0, 0
  %p41 = scmp.lt.s32.totalorder %s40, 0
  %s42 = scalar_select %p41, %s40, 0
  %p43 = scmp.lt.s32.totalorder %s42, 0
  %s44 = scalar_select %p43, %s42, 0
  %s45 = scalar_lea.vmem %s1, %s44
  %s46 = sadd.s32 0, 0
  %p47 = scmp.lt.s32.totalorder %s46, 0
  %s48 = scalar_select %p47, %s46, 0
  %s49 = smul.u32 2, %s48
  %p50 = scmp.lt.s32.totalorder %s49, 1
  %s51 = scalar_select %p50, %s49, 1
  %s52 = smul.addr %s51, 8
  %s53 = scalar_lea.vmem %s0, %s52
  %s54 = sadd.s32 0, 0
  %p55 = scmp.lt.s32.totalorder %s54, 0
  %s56 = scalar_select %p55, %s54, 0
  %s57 = smul.u32 2, %s56
  %s58 = sadd.s32 0, 0
  %p59 = scmp.lt.s32.totalorder %s58, 0
  %s60 = scalar_select %p59, %s58, 0
  %p61 = scmp.lt.s32.totalorder %s60, 0
  %s62 = scalar_select %p61, %s60, 0
  %s63 = scalar_lea.vmem %s1, %s62
  %s64 = sadd.s32 0, 0
  %p65 = scmp.lt.s32.totalorder %s64, 0
  %s66 = scalar_select %p65, %s64, 0
  %p67 = scmp.eq.s32.totalorder 0, 0
  // Predicated region
  $region10: #{_labels_loss_device.1} parent=0 // pred_check
    %p68 = pneg %p67
  $region11: #{_labels_loss_device.1} parent=0 // pred_check_branch
    %70 = sbr.rel (%p68) target = $region13
  $region12: #{_labels_loss_device.1} parent=0 // pred_region
    %vm71 = vcmask 3072
    %72 = vst.msk [vmem:[%s2] sm:$0xf] %vm71, 0.0
  $region13: #{_labels_loss_device.1} parent=0 // pred_fallthru
    _
  %s73 = sadd.s32 0, 0
  %v74 = vld [vmem:[%s53] sm:$0xff]
  %v75 = vld [vmem:[%s53 + $0x8] sm:$0xff]
  %76 = vxpose.xlu0.b32.start [1/16] %v74, 128
  %77 = vxpose.xlu0.b32.cont [2/16] %v75, 128
  %78 = vxpose.xlu0.b32.cont [3/16] 0.0, 128
  %79 = vxpose.xlu0.b32.cont [4/16] 0.0, 128
  %80 = vxpose.xlu0.b32.cont [5/16] 0.0, 128
  %81 = vxpose.xlu0.b32.cont [6/16] 0.0, 128
  %82 = vxpose.xlu0.b32.cont [7/16] 0.0, 128
  %83 = vxpose.xlu0.b32.cont [8/16] 0.0, 128
  %84 = vxpose.xlu0.b32.cont [9/16] 0.0, 128
  %85 = vxpose.xlu0.b32.cont [10/16] 0.0, 128
  %86 = vxpose.xlu0.b32.cont [11/16] 0.0, 128
  %87 = vxpose.xlu0.b32.cont [12/16] 0.0, 128
  %88 = vxpose.xlu0.b32.cont [13/16] 0.0, 128
  %89 = vxpose.xlu0.b32.cont [14/16] 0.0, 128
  %90 = vxpose.xlu0.b32.cont [15/16] 0.0, 128
  %91 = vxpose.xlu0.b32.end [16/16] 0.0, 128
  %v92 = vpop.trf.xlu0
  %v93 = vpop.trf.xlu0
  %v94 = vpop.trf.xlu0
  %v95 = vpop.trf.xlu0
  %v96 = vpop.trf.xlu0
  %v97 = vpop.trf.xlu0
  %v98 = vpop.trf.xlu0
  %v99 = vpop.trf.xlu0
  %v100 = vpop.trf.xlu0
  %v101 = vpop.trf.xlu0
  %v102 = vpop.trf.xlu0
  %v103 = vpop.trf.xlu0
  %v104 = vpop.trf.xlu0
  %v105 = vpop.trf.xlu0
  %v106 = vpop.trf.xlu0
  %v107 = vpop.trf.xlu0
  %v108 = vld [vmem:[%s63] sm:$0x1]
  %v109 = vlaneseq
  %v110 = vand.u32 %v109, 127
  %s111 = smul.u32 %s73, 16
  %v112 = vstv %s111
  %v113 = vadd.s32 %v112, %v110
  %vm114 = vcmp.lt.s32.totalorder %v113, 16
  %v115 = vsel %vm114, 1, 0
  %vm116 = vcmp.eq.s32.totalorder %v115, 1
  %v117 = vsel %vm116, %v92, 0.0
  %v118 = vsel %vm114, %v108, 4294967295
  %v119 = vlaneseq
  %v120 = vshrl.u32 %v119, 7
  %v121 = vlaneseq
  %v122 = vshrl.u32 %v121, 7
  %v123 = vsub.s32 0, %v122
  %v124 = vrot.slane %v118, %v123
  %vm125 = vcmp.eq.s32.totalorder %v120, %v124
  %vm126 = vcmask 130048
  %v127 = vsel %vm126, %v117, -inf
  %v128 = vrot.slane %v127, 4
  %v129 = vmax.f32 %v127, %v128
  %v130 = vrot.slane %v129, 2
  %v131 = vmax.f32 %v129, %v130
  %v132 = vrot.slane %v131, 1
  %v133 = vmax.f32 %v131, %v132
  %v134 = vsub.f32 %v117, %v133
  %v135 = vmul.f32 %v134, 1.442695
  %v136 = vpow.pop %v135
  %v137 = vsel %vm126, %v136, 0.0
  %v138 = vrot.slane %v137, 4
  %v139 = vadd.f32 %v137, %v138
  %v140 = vrot.slane %v139, 2
  %v141 = vadd.f32 %v139, %v140
  %v142 = vrot.slane %v141, 1
  %v143 = vadd.f32 %v141, %v142
  %v144 = vlog2.pop %v143
  %v145 = vmul.f32 %v144, 0.6931472
  %v146 = vsel %vm125, %v134, 0.0
  %v147 = vsel %vm126, %v146, 0.0
  %v148 = vrot.slane %v147, 4
  %v149 = vadd.f32 %v147, %v148
  %v150 = vrot.slane %v149, 2
  %v151 = vadd.f32 %v149, %v150
  %v152 = vrot.slane %v151, 1
  %v153 = vadd.f32 %v151, %v152
  %v154 = vsub.f32 %v145, %v153
  %vm155 = vcmp.ge.s32.totalorder %v118, 0
  %vm156 = vcmp.lt.s32.totalorder %v118, 8
  %vm157 = vmand %vm155, %vm156
  %vm158 = vcmp.eq.s32.totalorder %v118, 7
  %v159 = vsel %vm158, 0.1, 1.0
  %v160 = vsel %vm157, %v159, 0.0
  %vm161 = vcmp.ne.s32.totalorder %v118, 7
  %vm162 = vmand %vm155, %vm161
  %v163 = vsel %vm162, 1, 0
  %v164 = vcvt.s32.f32 %v163
  %vm165 = vcmp.eq.f32.partialorder %v134, 0.0
  %v166 = vsel %vm165, %v120, 8
  %v167 = vsel %vm126, %v166, 2147483647
  %v168 = vrot.slane %v167, 4
  %vm169 = vcmp.lt.s32.totalorder %v167, %v168
  %v170 = vsel %vm169, %v167, %v168
  %v171 = vrot.slane %v170, 2
  %vm172 = vcmp.lt.s32.totalorder %v170, %v171
  %v173 = vsel %vm172, %v170, %v171
  %v174 = vrot.slane %v173, 1
  %vm175 = vcmp.lt.s32.totalorder %v173, %v174
  %v176 = vsel %vm175, %v173, %v174
  %vm177 = vcmp.eq.s32.totalorder %v176, %v118
  %v178 = vsel %vm177, 1, 0
  %v179 = vcvt.s32.f32 %v178
  %v180 = vmul.f32 %v164, %v179
  %v181 = vmul.f32 %v160, %v154
  %v183 = vrot.slane %v160, 7
  %v186 = vrot.slane %v180, 6
  %v189 = vrot.slane %v164, 5
  %vm191 = vcmask 1040384
  %v192 = vsel %vm191, %v181, %v183
  %vm193 = vcmask 1041408
  %v194 = vsel %vm193, %v192, %v186
  %vm195 = vcmask 1042432
  %v196 = vsel %vm195, %v194, %v189
  %v197 = vld [vmem:[%s2] sm:$0xf]
  %vm198 = vcmask 125952
  %v199 = vsel %vm198, %v196, 0.0
  %200 = vadd.xlane.f32.xlu0 %v199
  %v201 = vpop.xlane.xlu0 %200
  %v202 = vadd.f32 %v197, %v201
  %vm203 = vcmask 3072
  %204 = vst.msk [vmem:[%s2] sm:$0xf] %vm203, %v202
  // Predicated region
  $region14: #{_labels_loss_device.1} parent=0 // pred_check
    _
  $region15: #{_labels_loss_device.1} parent=0 // pred_check_branch
    %206 = sbr.rel (0) target = $region17
  $region16: #{_labels_loss_device.1} parent=0 // pred_region
    _
  $region17: #{_labels_loss_device.1} parent=0 // pred_fallthru
    _
  // Predicated region
  $region18: #{_labels_loss_device.1} parent=0 // pred_check
    _
  $region19: #{_labels_loss_device.1} parent=0 // pred_check_branch
    %208 = sbr.rel (0) target = $region21
  $region20: #{_labels_loss_device.1} parent=0 // pred_region
    _
  $region21: #{_labels_loss_device.1} parent=0 // pred_fallthru
    _

</llo_original>
